<compile_context>
chip_gen: v7x
topology: tpu7x:2x2x1
jax: 0.10.0
libtpu: 0.0.40
codegen_flags: <defaults>
</compile_context>

<pallas_src>
import math
from functools import partial

import jax
import jax.numpy as jnp
from jax.experimental import pallas as pl
from jax.experimental.pallas import tpu as pltpu

LOG_STD_MIN = -10.0
LOG_STD_MAX = -2.0


def _policy_kernel(x_ref, w1_ref, b1_ref, w2_ref, b2_ref, w3_ref, b3_ref,
                   wh_ref, bh_ref, lo_ref, hi_ref, out_ref):
    cdt = w1_ref.dtype  # compute dtype for MXU operands (f32 or bf16)

    # Hidden layers: MXU matmul (f32 accumulate) + f32 bias + tanh (EUP slot).
    h = jnp.tanh(jnp.dot(x_ref[...], w1_ref[...],
                         preferred_element_type=jnp.float32) + b1_ref[...])
    h = jnp.tanh(jnp.dot(h.astype(cdt), w2_ref[...],
                         preferred_element_type=jnp.float32) + b2_ref[...])
    h = jnp.tanh(jnp.dot(h.astype(cdt), w3_ref[...],
                         preferred_element_type=jnp.float32) + b3_ref[...])

    # Fused heads: single matmul producing [mu | log_std | zero padding].
    head = jnp.dot(h.astype(cdt), wh_ref[...],
                   preferred_element_type=jnp.float32) + bh_ref[...]

    # Fused per-column clamp (action range for mu, log_std bounds for log_std,
    # +/-FLT_MAX no-ops for the pad columns).
    head = jnp.minimum(jnp.maximum(head, lo_ref[...]), hi_ref[...])

    out_ref[...] = head.astype(out_ref.dtype)  # lane-dense (TB, 128*k) store


@partial(jax.jit, static_argnames=("compute_dtype", "block_b"))
def gaussian_policy_forward(x, params, action_min, action_max, *,
                            compute_dtype=jnp.float32, block_b=512):
    """x: (B, input_dim).  Returns (mu, log_std), each (B, n_actions) float32.

    compute_dtype: jnp.float32 or jnp.bfloat16 for the MXU operands
                   (accumulation is always f32).
    block_b:       batch tile (multiple of 8) used when B > block_b.
    """
    assert block_b % 8 == 0, "block_b must be a multiple of 8 (sublane tiling)"
    B, input_dim = x.shape
    mlp_dim = params["w1"].shape[1]
    h3 = params["w3"].shape[1]
    n_actions = params["wm"].shape[1]

    # ---- Fuse the two heads + pad to a lane-dense (multiple of 128) width ----
    head_w = 2 * n_actions
    head_pad_w = pl.cdiv(head_w, 128) * 128
    pad = head_pad_w - head_w
    wh = jnp.pad(jnp.concatenate([params["wm"], params["ws"]], axis=1),
                 ((0, 0), (0, pad)))
    bh = jnp.pad(jnp.concatenate([params["bm"], params["bs"]], axis=1),
                 ((0, 0), (0, pad))).astype(jnp.float32)
    fmax = float(jnp.finfo(jnp.float32).max)
    lo = jnp.concatenate([action_min.astype(jnp.float32),
                          jnp.full((1, n_actions), LOG_STD_MIN, jnp.float32),
                          jnp.full((1, pad), -fmax, jnp.float32)], axis=1)
    hi = jnp.concatenate([action_max.astype(jnp.float32),
                          jnp.full((1, n_actions), LOG_STD_MAX, jnp.float32),
                          jnp.full((1, pad), fmax, jnp.float32)], axis=1)

    # ---- Batch tiling: single block for small B, TB-tiles (multiple of 8) else --
    if B <= block_b:
        tb, b_pad = B, B                    # full-extent block; no (8,128) issue
    else:
        tb = block_b
        b_pad = pl.cdiv(B, tb) * tb
    x_p = x if b_pad == B else jnp.pad(x, ((0, b_pad - B), (0, 0)))

    # ---- dtype prep: MXU operands in compute_dtype, everything else f32 ----
    xc = x_p.astype(compute_dtype)
    w1 = params["w1"].astype(compute_dtype)
    w2 = params["w2"].astype(compute_dtype)
    w3 = params["w3"].astype(compute_dtype)
    whc = wh.astype(compute_dtype)
    b1 = params["b1"].astype(jnp.float32)
    b2 = params["b2"].astype(jnp.float32)
    b3 = params["b3"].astype(jnp.float32)

    def const2d(shape):  # whole array, same block every step -> stays in VMEM
        return pl.BlockSpec(shape, lambda i: (0, 0))

    out = pl.pallas_call(
        _policy_kernel,
        out_shape=jax.ShapeDtypeStruct((b_pad, head_pad_w), jnp.float32),
        grid_spec=pltpu.PrefetchScalarGridSpec(
            num_scalar_prefetch=0,
            grid=(b_pad // tb,),
            in_specs=[
                pl.BlockSpec((tb, input_dim), lambda i: (i, 0)),   # x tile
                const2d((input_dim, mlp_dim)),                     # w1
                const2d((1, mlp_dim)),                             # b1
                const2d((mlp_dim, mlp_dim)),                       # w2
                const2d((1, mlp_dim)),                             # b2
                const2d((mlp_dim, h3)),                            # w3
                const2d((1, h3)),                                  # b3
                const2d((h3, head_pad_w)),                         # fused head W
                const2d((1, head_pad_w)),                          # fused head b
                const2d((1, head_pad_w)),                          # clamp lo
                const2d((1, head_pad_w)),                          # clamp hi
            ],
            out_specs=pl.BlockSpec((tb, head_pad_w), lambda i: (i, 0)),
        ),
        compiler_params=pltpu.CompilerParams(
            dimension_semantics=("parallel",)),   # v7x: shard batch over 2 TCs
    )(xc, w1, b1, w2, b2, w3, b3, whc, bh, lo, hi)

    mu = out[:B, :n_actions]
    log_std = out[:B, n_actions:head_w]
    return mu, log_std


def _init_linear(key, fan_in, fan_out):
    """PyTorch nn.Linear default init (uniform +/-1/sqrt(fan_in)); weight stored (in, out)."""
    kw, kb = jax.random.split(key)
    bound = 1.0 / math.sqrt(fan_in)
    w = jax.random.uniform(kw, (fan_in, fan_out), jnp.float32, -bound, bound)
    b = jax.random.uniform(kb, (1, fan_out), jnp.float32, -bound, bound)
    return w, b


def make_params(key, input_dim, mlp_dim, n_actions):
    keys = jax.random.split(key, 5)
    w1, b1 = _init_linear(keys[0], input_dim, mlp_dim)
    w2, b2 = _init_linear(keys[1], mlp_dim, mlp_dim)
    w3, b3 = _init_linear(keys[2], mlp_dim, mlp_dim // 2)
    wm, bm = _init_linear(keys[3], mlp_dim // 2, n_actions)
    ws, bs = _init_linear(keys[4], mlp_dim // 2, n_actions)
    return dict(w1=w1, b1=b1, w2=w2, b2=b2, w3=w3, b3=b3,
                wm=wm, bm=bm, ws=ws, bs=bs)


def reference_forward(x, params, action_min, action_max):
    h = jnp.tanh(x @ params["w1"] + params["b1"])
    h = jnp.tanh(h @ params["w2"] + params["b2"])
    h = jnp.tanh(h @ params["w3"] + params["b3"])
    mu = h @ params["wm"] + params["bm"]
    log_std = jnp.clip(h @ params["ws"] + params["bs"], LOG_STD_MIN, LOG_STD_MAX)
    mu = jnp.clip(mu, action_min, action_max)
    return mu, log_std


if __name__ == "__main__":
    input_dim, mlp_dim, n_actions = 16, 32, 4

    key = jax.random.PRNGKey(0)
    k_params, k_x_small, k_x_big = jax.random.split(key, 3)

    params = make_params(k_params, input_dim, mlp_dim, n_actions)

    # Synthetic action_range (stands in for `search_space`): per-action (min, max).
    action_range = {f"a{i}": (-1.0 - 0.1 * i, 1.0 + 0.1 * i) for i in range(n_actions)}
    action_min = jnp.array([[action_range[k][0] for k in action_range]], jnp.float32)
    action_max = jnp.array([[action_range[k][1] for k in action_range]], jnp.float32)

    # 1) Small batch (single grid step), f32 — exact-semantics check.
    B = 8
    x = jax.random.normal(k_x_small, (B, input_dim), jnp.float32)
    mu, log_std = gaussian_policy_forward(x, params, action_min, action_max)
    jax.block_until_ready((mu, log_std))
    mu_ref, ls_ref = reference_forward(x, params, action_min, action_max)
    assert mu.shape == (B, n_actions) and log_std.shape == (B, n_actions)
    assert jnp.allclose(mu, mu_ref, atol=1e-5, rtol=1e-5)
    assert jnp.allclose(log_std, ls_ref, atol=1e-5, rtol=1e-5)

    # 2) Larger, non-multiple-of-tile batch — exercises the batch grid, padding
    #    and the parallel (megacore) grid axis.
    Bb = 1030
    xb = jax.random.normal(k_x_big, (Bb, input_dim), jnp.float32)
    mu_b, ls_b = gaussian_policy_forward(xb, params, action_min, action_max,
                                         block_b=512)
    jax.block_until_ready((mu_b, ls_b))
    mu_bref, ls_bref = reference_forward(xb, params, action_min, action_max)
    assert mu_b.shape == (Bb, n_actions) and ls_b.shape == (Bb, n_actions)
    assert jnp.allclose(mu_b, mu_bref, atol=1e-5, rtol=1e-5)
    assert jnp.allclose(ls_b, ls_bref, atol=1e-5, rtol=1e-5)

    # 3) bf16 MXU operands (f32 accumulate) — the v6e/v7x throughput path.
    mu16, ls16 = gaussian_policy_forward(xb, params, action_min, action_max,
                                         compute_dtype=jnp.bfloat16, block_b=512)
    jax.block_until_ready((mu16, ls16))
    assert jnp.allclose(mu16, mu_bref, atol=1e-1, rtol=1e-1)
    assert jnp.allclose(ls16, ls_bref, atol=1e-1, rtol=1e-1)

    # TODO(synk): `sample()` (rsample + log_prob + entropy) is stochastic and not
    # part of forward(); only forward() is implemented here.
    print("KERNEL_OK")
</pallas_src>

<mosaic_0001>
module attributes {stable_mosaic.version = 11 : i64} {
  func.func @_policy_kernel(%arg0: i32, %arg1: memref<8x16xf32, #tpu.memory_space<vmem>>, %arg2: memref<16x32xf32, #tpu.memory_space<vmem>>, %arg3: memref<1x32xf32, #tpu.memory_space<vmem>>, %arg4: memref<32x32xf32, #tpu.memory_space<vmem>>, %arg5: memref<1x32xf32, #tpu.memory_space<vmem>>, %arg6: memref<32x16xf32, #tpu.memory_space<vmem>>, %arg7: memref<1x16xf32, #tpu.memory_space<vmem>>, %arg8: memref<16x128xf32, #tpu.memory_space<vmem>>, %arg9: memref<1x128xf32, #tpu.memory_space<vmem>>, %arg10: memref<1x128xf32, #tpu.memory_space<vmem>>, %arg11: memref<1x128xf32, #tpu.memory_space<vmem>>, %arg12: memref<8x128xf32, #tpu.memory_space<vmem>>) attributes {dimension_semantics = [#tpu.dimension_semantics<parallel>], iteration_bounds = array<i64: 1>, scalar_prefetch = 0 : i64, scratch_operands = 0 : i64, tpu.core_type = #tpu.core_type<tc>, window_params = [{transform_indices = @transform_0, window_bounds = array<i64: 8, 16>}, {pipeline_mode = #tpu.pipeline_mode<synchronous>, transform_indices = @transform_1, window_bounds = array<i64: 16, 32>}, {pipeline_mode = #tpu.pipeline_mode<synchronous>, transform_indices = @transform_2, window_bounds = array<i64: 1, 32>}, {pipeline_mode = #tpu.pipeline_mode<synchronous>, transform_indices = @transform_3, window_bounds = array<i64: 32, 32>}, {pipeline_mode = #tpu.pipeline_mode<synchronous>, transform_indices = @transform_4, window_bounds = array<i64: 1, 32>}, {pipeline_mode = #tpu.pipeline_mode<synchronous>, transform_indices = @transform_5, window_bounds = array<i64: 32, 16>}, {pipeline_mode = #tpu.pipeline_mode<synchronous>, transform_indices = @transform_6, window_bounds = array<i64: 1, 16>}, {pipeline_mode = #tpu.pipeline_mode<synchronous>, transform_indices = @transform_7, window_bounds = array<i64: 16, 128>}, {pipeline_mode = #tpu.pipeline_mode<synchronous>, transform_indices = @transform_8, window_bounds = array<i64: 1, 128>}, {pipeline_mode = #tpu.pipeline_mode<synchronous>, transform_indices = @transform_9, window_bounds = array<i64: 1, 128>}, {pipeline_mode = #tpu.pipeline_mode<synchronous>, transform_indices = @transform_10, window_bounds = array<i64: 1, 128>}, {transform_indices = @transform_11, window_bounds = array<i64: 8, 128>}]} {
    %c0 = arith.constant 0 : index
    %c0_0 = arith.constant 0 : index
    %0 = vector.load %arg1[%c0, %c0_0] : memref<8x16xf32, #tpu.memory_space<vmem>>, vector<8x16xf32>
    %c0_1 = arith.constant 0 : index
    %c0_2 = arith.constant 0 : index
    %1 = vector.load %arg2[%c0_1, %c0_2] : memref<16x32xf32, #tpu.memory_space<vmem>>, vector<16x32xf32>
    %cst = arith.constant dense<0.000000e+00> : vector<8x32xf32>
    %2 = tpu.matmul %0, %1, %cst {dimension_numbers = #tpu.dot_dimension_numbers<[1], [0], [0], [1], [0, 0, 1, 1], [], []>} : vector<8x16xf32>, vector<16x32xf32>, vector<8x32xf32> -> vector<8x32xf32>
    %c0_3 = arith.constant 0 : index
    %c0_4 = arith.constant 0 : index
    %3 = vector.load %arg3[%c0_3, %c0_4] : memref<1x32xf32, #tpu.memory_space<vmem>>, vector<1x32xf32>
    %4 = vector.broadcast %3 : vector<1x32xf32> to vector<8x32xf32>
    %5 = arith.addf %2, %4 : vector<8x32xf32>
    %6 = math.tanh %5 : vector<8x32xf32>
    %c0_5 = arith.constant 0 : index
    %c0_6 = arith.constant 0 : index
    %7 = vector.load %arg4[%c0_5, %c0_6] : memref<32x32xf32, #tpu.memory_space<vmem>>, vector<32x32xf32>
    %cst_7 = arith.constant dense<0.000000e+00> : vector<8x32xf32>
    %8 = tpu.matmul %6, %7, %cst_7 {dimension_numbers = #tpu.dot_dimension_numbers<[1], [0], [0], [1], [0, 0, 1, 1], [], []>} : vector<8x32xf32>, vector<32x32xf32>, vector<8x32xf32> -> vector<8x32xf32>
    %c0_8 = arith.constant 0 : index
    %c0_9 = arith.constant 0 : index
    %9 = vector.load %arg5[%c0_8, %c0_9] : memref<1x32xf32, #tpu.memory_space<vmem>>, vector<1x32xf32>
    %10 = vector.broadcast %9 : vector<1x32xf32> to vector<8x32xf32>
    %11 = arith.addf %8, %10 : vector<8x32xf32>
    %12 = math.tanh %11 : vector<8x32xf32>
    %c0_10 = arith.constant 0 : index
    %c0_11 = arith.constant 0 : index
    %13 = vector.load %arg6[%c0_10, %c0_11] : memref<32x16xf32, #tpu.memory_space<vmem>>, vector<32x16xf32>
    %cst_12 = arith.constant dense<0.000000e+00> : vector<8x16xf32>
    %14 = tpu.matmul %12, %13, %cst_12 {dimension_numbers = #tpu.dot_dimension_numbers<[1], [0], [0], [1], [0, 0, 1, 1], [], []>} : vector<8x32xf32>, vector<32x16xf32>, vector<8x16xf32> -> vector<8x16xf32>
    %c0_13 = arith.constant 0 : index
    %c0_14 = arith.constant 0 : index
    %15 = vector.load %arg7[%c0_13, %c0_14] : memref<1x16xf32, #tpu.memory_space<vmem>>, vector<1x16xf32>
    %16 = vector.broadcast %15 : vector<1x16xf32> to vector<8x16xf32>
    %17 = arith.addf %14, %16 : vector<8x16xf32>
    %18 = math.tanh %17 : vector<8x16xf32>
    %c0_15 = arith.constant 0 : index
    %c0_16 = arith.constant 0 : index
    %19 = vector.load %arg8[%c0_15, %c0_16] : memref<16x128xf32, #tpu.memory_space<vmem>>, vector<16x128xf32>
    %cst_17 = arith.constant dense<0.000000e+00> : vector<8x128xf32>
    %20 = tpu.matmul %18, %19, %cst_17 {dimension_numbers = #tpu.dot_dimension_numbers<[1], [0], [0], [1], [0, 0, 1, 1], [], []>} : vector<8x16xf32>, vector<16x128xf32>, vector<8x128xf32> -> vector<8x128xf32>
    %c0_18 = arith.constant 0 : index
    %c0_19 = arith.constant 0 : index
    %21 = vector.load %arg9[%c0_18, %c0_19] : memref<1x128xf32, #tpu.memory_space<vmem>>, vector<1x128xf32>
    %22 = vector.broadcast %21 : vector<1x128xf32> to vector<8x128xf32>
    %23 = arith.addf %20, %22 : vector<8x128xf32>
    %c0_20 = arith.constant 0 : index
    %c0_21 = arith.constant 0 : index
    %24 = vector.load %arg10[%c0_20, %c0_21] : memref<1x128xf32, #tpu.memory_space<vmem>>, vector<1x128xf32>
    %25 = vector.broadcast %24 : vector<1x128xf32> to vector<8x128xf32>
    %26 = arith.maximumf %23, %25 : vector<8x128xf32>
    %c0_22 = arith.constant 0 : index
    %c0_23 = arith.constant 0 : index
    %27 = vector.load %arg11[%c0_22, %c0_23] : memref<1x128xf32, #tpu.memory_space<vmem>>, vector<1x128xf32>
    %28 = vector.broadcast %27 : vector<1x128xf32> to vector<8x128xf32>
    %29 = arith.minimumf %26, %28 : vector<8x128xf32>
    %c0_24 = arith.constant 0 : index
    %c0_25 = arith.constant 0 : index
    %30 = vector.load %arg12[%c0_24, %c0_25] : memref<8x128xf32, #tpu.memory_space<vmem>>, vector<8x128xf32>
    tpu.vector_store %arg12[%c0_24, %c0_25], %29 {strides = array<i32>} : memref<8x128xf32, #tpu.memory_space<vmem>>, vector<8x128xf32>,
    return
  }
  func.func @transform_0(%arg0: i32) -> (i32, i32) {
    %c0_i32 = arith.constant 0 : i32
    %c0_i32_0 = arith.constant 0 : i32
    return %arg0, %c0_i32 : i32, i32
  }
  func.func @transform_1(%arg0: i32) -> (i32, i32) {
    %c0_i32 = arith.constant 0 : i32
    %c0_i32_0 = arith.constant 0 : i32
    %c0_i32_1 = arith.constant 0 : i32
    return %c0_i32, %c0_i32_0 : i32, i32
  }
  func.func @transform_2(%arg0: i32) -> (i32, i32) {
    %c0_i32 = arith.constant 0 : i32
    %c0_i32_0 = arith.constant 0 : i32
    %c0_i32_1 = arith.constant 0 : i32
    return %c0_i32, %c0_i32_0 : i32, i32
  }
  func.func @transform_3(%arg0: i32) -> (i32, i32) {
    %c0_i32 = arith.constant 0 : i32
    %c0_i32_0 = arith.constant 0 : i32
    %c0_i32_1 = arith.constant 0 : i32
    return %c0_i32, %c0_i32_0 : i32, i32
  }
  func.func @transform_4(%arg0: i32) -> (i32, i32) {
    %c0_i32 = arith.constant 0 : i32
    %c0_i32_0 = arith.constant 0 : i32
    %c0_i32_1 = arith.constant 0 : i32
    return %c0_i32, %c0_i32_0 : i32, i32
  }
  func.func @transform_5(%arg0: i32) -> (i32, i32) {
    %c0_i32 = arith.constant 0 : i32
    %c0_i32_0 = arith.constant 0 : i32
    %c0_i32_1 = arith.constant 0 : i32
    return %c0_i32, %c0_i32_0 : i32, i32
  }
  func.func @transform_6(%arg0: i32) -> (i32, i32) {
    %c0_i32 = arith.constant 0 : i32
    %c0_i32_0 = arith.constant 0 : i32
    %c0_i32_1 = arith.constant 0 : i32
    return %c0_i32, %c0_i32_0 : i32, i32
  }
  func.func @transform_7(%arg0: i32) -> (i32, i32) {
    %c0_i32 = arith.constant 0 : i32
    %c0_i32_0 = arith.constant 0 : i32
    %c0_i32_1 = arith.constant 0 : i32
    return %c0_i32, %c0_i32_0 : i32, i32
  }
  func.func @transform_8(%arg0: i32) -> (i32, i32) {
    %c0_i32 = arith.constant 0 : i32
    %c0_i32_0 = arith.constant 0 : i32
    %c0_i32_1 = arith.constant 0 : i32
    return %c0_i32, %c0_i32_0 : i32, i32
  }
  func.func @transform_9(%arg0: i32) -> (i32, i32) {
    %c0_i32 = arith.constant 0 : i32
    %c0_i32_0 = arith.constant 0 : i32
    %c0_i32_1 = arith.constant 0 : i32
    return %c0_i32, %c0_i32_0 : i32, i32
  }
  func.func @transform_10(%arg0: i32) -> (i32, i32) {
    %c0_i32 = arith.constant 0 : i32
    %c0_i32_0 = arith.constant 0 : i32
    %c0_i32_1 = arith.constant 0 : i32
    return %c0_i32, %c0_i32_0 : i32, i32
  }
  func.func @transform_11(%arg0: i32) -> (i32, i32) {
    %c0_i32 = arith.constant 0 : i32
    %c0_i32_0 = arith.constant 0 : i32
    return %arg0, %c0_i32 : i32, i32
  }
}

</mosaic_0001>

<llo_original>
// kernel: gaussian_policy_forward.1
$region0: #{gaussian_policy_forward.1}
  #allocation0 [shape = 'u32[]', space=smem, size = 0x4, offset = 0x4, fixed_abs, tag = 'smem constant byte address 0x4 - core index']
  #allocation1 [shape = 'u32[144,128]{1,0:T(1,128)}', space=vmem, size = 0x12000, scoped, tag = 'internal scratch']
  %s0 = inlined_call_operand.vmem [shape: f32[8,16], index: 0, kind: input, shape index: {}]
  %s1 = inlined_call_operand.vmem [shape: f32[16,32], index: 1, kind: input, shape index: {}]
  %s2 = inlined_call_operand.vmem [shape: f32[1,32], index: 2, kind: input, shape index: {}]
  %s3 = inlined_call_operand.vmem [shape: f32[32,32], index: 3, kind: input, shape index: {}]
  %s4 = inlined_call_operand.vmem [shape: f32[1,32], index: 4, kind: input, shape index: {}]
  %s5 = inlined_call_operand.vmem [shape: f32[32,16], index: 5, kind: input, shape index: {}]
  %s6 = inlined_call_operand.vmem [shape: f32[1,16], index: 6, kind: input, shape index: {}]
  %s7 = inlined_call_operand.vmem [shape: f32[16,128], index: 7, kind: input, shape index: {}]
  %s8 = inlined_call_operand.vmem [shape: f32[1,128], index: 8, kind: input, shape index: {}]
  %s9 = inlined_call_operand.vmem [shape: f32[1,128], index: 9, kind: input, shape index: {}]
  %s10 = inlined_call_operand.vmem [shape: f32[1,128], index: 10, kind: input, shape index: {}]
  %s11 = inlined_call_operand.vmem [shape: f32[8,128], index: 11, kind: output, shape index: {}]
  %s12 = sld [smem:[#allocation0]]
  $region54: #{gaussian_policy_forward.1} parent=0
    _
  %s14 = ssub.s32 1, %s12
  %s15 = scalar_select 0, %s14, %s12
  // Predicated region
  $region2: #{gaussian_policy_forward.1} parent=0 // pred_check
    _
  $region3: #{gaussian_policy_forward.1} parent=0 // pred_check_branch
    %17 = sbr.rel (0) target = $region5
  $region4: #{gaussian_policy_forward.1} parent=0 // pred_region
    _
  $region5: #{gaussian_policy_forward.1} parent=0 // pred_fallthru
    _
  // Predicated region
  $region6: #{gaussian_policy_forward.1} parent=0 // pred_check
    _
  $region7: #{gaussian_policy_forward.1} parent=0 // pred_check_branch
    %19 = sbr.rel (0) target = $region9
  $region8: #{gaussian_policy_forward.1} parent=0 // pred_region
    _
  $region9: #{gaussian_policy_forward.1} parent=0 // pred_fallthru
    _
  // Predicated region
  $region10: #{gaussian_policy_forward.1} parent=0 // pred_check
    _
  $region11: #{gaussian_policy_forward.1} parent=0 // pred_check_branch
    %21 = sbr.rel (0) target = $region13
  $region12: #{gaussian_policy_forward.1} parent=0 // pred_region
    _
  $region13: #{gaussian_policy_forward.1} parent=0 // pred_fallthru
    _
  // Predicated region
  $region14: #{gaussian_policy_forward.1} parent=0 // pred_check
    _
  $region15: #{gaussian_policy_forward.1} parent=0 // pred_check_branch
    %23 = sbr.rel (0) target = $region17
  $region16: #{gaussian_policy_forward.1} parent=0 // pred_region
    _
  $region17: #{gaussian_policy_forward.1} parent=0 // pred_fallthru
    _
  // Predicated region
  $region18: #{gaussian_policy_forward.1} parent=0 // pred_check
    _
  $region19: #{gaussian_policy_forward.1} parent=0 // pred_check_branch
    %25 = sbr.rel (0) target = $region21
  $region20: #{gaussian_policy_forward.1} parent=0 // pred_region
    _
  $region21: #{gaussian_policy_forward.1} parent=0 // pred_fallthru
    _
  // Predicated region
  $region22: #{gaussian_policy_forward.1} parent=0 // pred_check
    _
  $region23: #{gaussian_policy_forward.1} parent=0 // pred_check_branch
    %27 = sbr.rel (0) target = $region25
  $region24: #{gaussian_policy_forward.1} parent=0 // pred_region
    _
  $region25: #{gaussian_policy_forward.1} parent=0 // pred_fallthru
    _
  // Predicated region
  $region26: #{gaussian_policy_forward.1} parent=0 // pred_check
    _
  $region27: #{gaussian_policy_forward.1} parent=0 // pred_check_branch
    %29 = sbr.rel (0) target = $region29
  $region28: #{gaussian_policy_forward.1} parent=0 // pred_region
    _
  $region29: #{gaussian_policy_forward.1} parent=0 // pred_fallthru
    _
  // Predicated region
  $region30: #{gaussian_policy_forward.1} parent=0 // pred_check
    _
  $region31: #{gaussian_policy_forward.1} parent=0 // pred_check_branch
    %31 = sbr.rel (0) target = $region33
  $region32: #{gaussian_policy_forward.1} parent=0 // pred_region
    _
  $region33: #{gaussian_policy_forward.1} parent=0 // pred_fallthru
    _
  // Predicated region
  $region34: #{gaussian_policy_forward.1} parent=0 // pred_check
    _
  $region35: #{gaussian_policy_forward.1} parent=0 // pred_check_branch
    %33 = sbr.rel (0) target = $region37
  $region36: #{gaussian_policy_forward.1} parent=0 // pred_region
    _
  $region37: #{gaussian_policy_forward.1} parent=0 // pred_fallthru
    _
  // Predicated region
  $region38: #{gaussian_policy_forward.1} parent=0 // pred_check
    _
  $region39: #{gaussian_policy_forward.1} parent=0 // pred_check_branch
    %35 = sbr.rel (0) target = $region41
  $region40: #{gaussian_policy_forward.1} parent=0 // pred_region
    _
  $region41: #{gaussian_policy_forward.1} parent=0 // pred_fallthru
    _
  // Predicated region
  $region42: #{gaussian_policy_forward.1} parent=0 // pred_check
    _
  $region43: #{gaussian_policy_forward.1} parent=0 // pred_check_branch
    %37 = sbr.rel (0) target = $region45
  $region44: #{gaussian_policy_forward.1} parent=0 // pred_region
    _
  $region45: #{gaussian_policy_forward.1} parent=0 // pred_fallthru
    _
  %v38 = vld [vmem:[%s0] sm:$0xff]
  %v39 = vld [vmem:[%s1] sm:$0xff]
  %v40 = vld [vmem:[%s1 + $0x8] sm:$0xff]
  %v41 = vld [vmem:[%s2] sm:$0x1]
  %v43 = vlaneseq
  %v44 = vshrl.u32 %v43, 7
  %v45 = vsub.s32 0, %v44
  %v46 = vrot.slane %v41, %v45
  %vm48 = vcmask 130048
  %v50 = vsel %vm48, %v38, 0
  %52 = vmatprep.subr.mxu0 0.0
  %53 = vmatpush1.msra.mxu0 %v39
  %54 = vmatprep.subr.mxu0 0.0
  %55 = vmatpush1.msra.mxu0 %v40
  %56 = vmatprep.subr.mxu0 0.0
  %57 = vmatpush1.msra.mxu0 0.0
  %58 = vmatprep.subr.mxu0 0.0
  %59 = vmatpush1.msra.mxu0 0.0
  %60 = vmatprep.subr.mxu0 0.0
  %61 = vmatpush1.msra.mxu0 0.0
  %62 = vmatprep.subr.mxu0 0.0
  %63 = vmatpush1.msra.mxu0 0.0
  %64 = vmatprep.subr.mxu0 0.0
  %65 = vmatpush1.msra.mxu0 0.0
  %66 = vmatprep.subr.mxu0 0.0
  %67 = vmatpush1.msra.mxu0 0.0
  %68 = vmatprep.subr.mxu0 0.0
  %69 = vmatpush1.msra.mxu0 0.0
  %70 = vmatprep.subr.mxu0 0.0
  %71 = vmatpush1.msra.mxu0 0.0
  %72 = vmatprep.subr.mxu0 0.0
  %73 = vmatpush1.msra.mxu0 0.0
  %74 = vmatprep.subr.mxu0 0.0
  %75 = vmatpush1.msra.mxu0 0.0
  %76 = vmatprep.subr.mxu0 0.0
  %77 = vmatpush1.msra.mxu0 0.0
  %78 = vmatprep.subr.mxu0 0.0
  %79 = vmatpush1.msra.mxu0 0.0
  %80 = vmatprep.subr.mxu0 0.0
  %81 = vmatpush1.msra.mxu0 0.0
  %82 = vmatprep.subr.mxu0 0.0
  %83 = vmatpush1.msra.mxu0 0.0
  %84 = vmatprep.subr.mxu0 0.0
  %85 = vmatpush1.msra.mxu0 0.0
  %86 = vmatprep.subr.mxu0 0.0
  %87 = vmatpush1.msra.mxu0 0.0
  %88 = vmatprep.subr.mxu0 0.0
  %89 = vmatpush1.msra.mxu0 0.0
  %90 = vmatprep.subr.mxu0 0.0
  %91 = vmatpush1.msra.mxu0 0.0
  %92 = vmatprep.subr.mxu0 0.0
  %93 = vmatpush1.msra.mxu0 0.0
  %94 = vmatprep.subr.mxu0 0.0
  %95 = vmatpush1.msra.mxu0 0.0
  %96 = vmatprep.subr.mxu0 0.0
  %97 = vmatpush1.msra.mxu0 0.0
  %98 = vmatprep.subr.mxu0 0.0
  %99 = vmatpush1.msra.mxu0 0.0
  %100 = vmatprep.subr.mxu0 0.0
  %101 = vmatpush1.msra.mxu0 0.0
  %102 = vmatprep.subr.mxu0 0.0
  %103 = vmatpush1.msra.mxu0 0.0
  %104 = vmatprep.subr.mxu0 0.0
  %105 = vmatpush1.msra.mxu0 0.0
  %106 = vmatprep.subr.mxu0 0.0
  %107 = vmatpush1.msra.mxu0 0.0
  %108 = vmatprep.subr.mxu0 0.0
  %109 = vmatpush1.msra.mxu0 0.0
  %110 = vmatprep.subr.mxu0 0.0
  %111 = vmatpush1.msra.mxu0 0.0
  %112 = vmatprep.subr.mxu0 0.0
  %113 = vmatpush1.msra.mxu0 0.0
  %114 = vmatprep.subr.mxu0 0.0
  %115 = vmatpush1.msra.mxu0 0.0
  %116 = vmatprep.mubr.f32.mxu0 0.0
  %117 = vmatmul.mubr.f32.gmra.mrb[0].mxu0 %v50
  %v118 = vpop.f32.mrb[0].mxu0
  %v119 = vadd.f32 %v46, %v118
  %v120 = vpop.f32.mrb[0].mxu0
  %121 = vdwg.mxu0
  %v122 = vtanh.pop %v119
  %v123 = vld [vmem:[%s3] sm:$0xff]
  %v124 = vld [vmem:[%s3 + $0x8] sm:$0xff]
  %v125 = vld [vmem:[%s3 + $0x10] sm:$0xff]
  %v126 = vld [vmem:[%s3 + $0x18] sm:$0xff]
  %v127 = vld [vmem:[%s4] sm:$0x1]
  %v129 = vlaneseq
  %v130 = vshrl.u32 %v129, 7
  %v131 = vsub.s32 0, %v130
  %v132 = vrot.slane %v127, %v131
  %vm134 = vcmask 261120
  %v136 = vsel %vm134, %v122, 0
  %138 = vmatprep.subr.mxu0 0.0
  %139 = vmatpush1.msra.mxu0 %v123
  %140 = vmatprep.subr.mxu0 0.0
  %141 = vmatpush1.msra.mxu0 %v124
  %142 = vmatprep.subr.mxu0 0.0
  %143 = vmatpush1.msra.mxu0 %v125
  %144 = vmatprep.subr.mxu0 0.0
  %145 = vmatpush1.msra.mxu0 %v126
  %146 = vmatprep.subr.mxu0 0.0
  %147 = vmatpush1.msra.mxu0 0.0
  %148 = vmatprep.subr.mxu0 0.0
  %149 = vmatpush1.msra.mxu0 0.0
  %150 = vmatprep.subr.mxu0 0.0
  %151 = vmatpush1.msra.mxu0 0.0
  %152 = vmatprep.subr.mxu0 0.0
  %153 = vmatpush1.msra.mxu0 0.0
  %154 = vmatprep.subr.mxu0 0.0
  %155 = vmatpush1.msra.mxu0 0.0
  %156 = vmatprep.subr.mxu0 0.0
  %157 = vmatpush1.msra.mxu0 0.0
  %158 = vmatprep.subr.mxu0 0.0
  %159 = vmatpush1.msra.mxu0 0.0
  %160 = vmatprep.subr.mxu0 0.0
  %161 = vmatpush1.msra.mxu0 0.0
  %162 = vmatprep.subr.mxu0 0.0
  %163 = vmatpush1.msra.mxu0 0.0
  %164 = vmatprep.subr.mxu0 0.0
  %165 = vmatpush1.msra.mxu0 0.0
  %166 = vmatprep.subr.mxu0 0.0
  %167 = vmatpush1.msra.mxu0 0.0
  %168 = vmatprep.subr.mxu0 0.0
  %169 = vmatpush1.msra.mxu0 0.0
  %170 = vmatprep.subr.mxu0 0.0
  %171 = vmatpush1.msra.mxu0 0.0
  %172 = vmatprep.subr.mxu0 0.0
  %173 = vmatpush1.msra.mxu0 0.0
  %174 = vmatprep.subr.mxu0 0.0
  %175 = vmatpush1.msra.mxu0 0.0
  %176 = vmatprep.subr.mxu0 0.0
  %177 = vmatpush1.msra.mxu0 0.0
  %178 = vmatprep.subr.mxu0 0.0
  %179 = vmatpush1.msra.mxu0 0.0
  %180 = vmatprep.subr.mxu0 0.0
  %181 = vmatpush1.msra.mxu0 0.0
  %182 = vmatprep.subr.mxu0 0.0
  %183 = vmatpush1.msra.mxu0 0.0
  %184 = vmatprep.subr.mxu0 0.0
  %185 = vmatpush1.msra.mxu0 0.0
  %186 = vmatprep.subr.mxu0 0.0
  %187 = vmatpush1.msra.mxu0 0.0
  %188 = vmatprep.subr.mxu0 0.0
  %189 = vmatpush1.msra.mxu0 0.0
  %190 = vmatprep.subr.mxu0 0.0
  %191 = vmatpush1.msra.mxu0 0.0
  %192 = vmatprep.subr.mxu0 0.0
  %193 = vmatpush1.msra.mxu0 0.0
  %194 = vmatprep.subr.mxu0 0.0
  %195 = vmatpush1.msra.mxu0 0.0
  %196 = vmatprep.subr.mxu0 0.0
  %197 = vmatpush1.msra.mxu0 0.0
  %198 = vmatprep.subr.mxu0 0.0
  %199 = vmatpush1.msra.mxu0 0.0
  %200 = vmatprep.subr.mxu0 0.0
  %201 = vmatpush1.msra.mxu0 0.0
  %202 = vmatprep.mubr.f32.mxu0 0.0
  %203 = vmatmul.mubr.f32.gmra.mrb[0].mxu0 %v136
  %v204 = vpop.f32.mrb[0].mxu0
  %v205 = vadd.f32 %v132, %v204
  %v206 = vpop.f32.mrb[0].mxu0
  %207 = vdwg.mxu0
  %v208 = vtanh.pop %v205
  %v209 = vld [vmem:[%s5] sm:$0xff]
  %v210 = vld [vmem:[%s5 + $0x8] sm:$0xff]
  %v211 = vld [vmem:[%s5 + $0x10] sm:$0xff]
  %v212 = vld [vmem:[%s5 + $0x18] sm:$0xff]
  %v213 = vld [vmem:[%s6] sm:$0x1]
  %v215 = vlaneseq
  %v216 = vshrl.u32 %v215, 7
  %v217 = vsub.s32 0, %v216
  %v218 = vrot.slane %v213, %v217
  %v221 = vsel %vm134, %v208, 0
  %223 = vmatprep.subr.mxu0 0.0
  %224 = vmatpush1.msra.mxu0 %v209
  %225 = vmatprep.subr.mxu0 0.0
  %226 = vmatpush1.msra.mxu0 %v210
  %227 = vmatprep.subr.mxu0 0.0
  %228 = vmatpush1.msra.mxu0 %v211
  %229 = vmatprep.subr.mxu0 0.0
  %230 = vmatpush1.msra.mxu0 %v212
  %231 = vmatprep.subr.mxu0 0.0
  %232 = vmatpush1.msra.mxu0 0.0
  %233 = vmatprep.subr.mxu0 0.0
  %234 = vmatpush1.msra.mxu0 0.0
  %235 = vmatprep.subr.mxu0 0.0
  %236 = vmatpush1.msra.mxu0 0.0
  %237 = vmatprep.subr.mxu0 0.0
  %238 = vmatpush1.msra.mxu0 0.0
  %239 = vmatprep.subr.mxu0 0.0
  %240 = vmatpush1.msra.mxu0 0.0
  %241 = vmatprep.subr.mxu0 0.0
  %242 = vmatpush1.msra.mxu0 0.0
  %243 = vmatprep.subr.mxu0 0.0
  %244 = vmatpush1.msra.mxu0 0.0
  %245 = vmatprep.subr.mxu0 0.0
  %246 = vmatpush1.msra.mxu0 0.0
  %247 = vmatprep.subr.mxu0 0.0
  %248 = vmatpush1.msra.mxu0 0.0
  %249 = vmatprep.subr.mxu0 0.0
  %250 = vmatpush1.msra.mxu0 0.0
  %251 = vmatprep.subr.mxu0 0.0
  %252 = vmatpush1.msra.mxu0 0.0
  %253 = vmatprep.subr.mxu0 0.0
  %254 = vmatpush1.msra.mxu0 0.0
  %255 = vmatprep.subr.mxu0 0.0
  %256 = vmatpush1.msra.mxu0 0.0
  %257 = vmatprep.subr.mxu0 0.0
  %258 = vmatpush1.msra.mxu0 0.0
  %259 = vmatprep.subr.mxu0 0.0
  %260 = vmatpush1.msra.mxu0 0.0
  %261 = vmatprep.subr.mxu0 0.0
  %262 = vmatpush1.msra.mxu0 0.0
  %263 = vmatprep.subr.mxu0 0.0
  %264 = vmatpush1.msra.mxu0 0.0
  %265 = vmatprep.subr.mxu0 0.0
  %266 = vmatpush1.msra.mxu0 0.0
  %267 = vmatprep.subr.mxu0 0.0
  %268 = vmatpush1.msra.mxu0 0.0
  %269 = vmatprep.subr.mxu0 0.0
  %270 = vmatpush1.msra.mxu0 0.0
  %271 = vmatprep.subr.mxu0 0.0
  %272 = vmatpush1.msra.mxu0 0.0
  %273 = vmatprep.subr.mxu0 0.0
  %274 = vmatpush1.msra.mxu0 0.0
  %275 = vmatprep.subr.mxu0 0.0
  %276 = vmatpush1.msra.mxu0 0.0
  %277 = vmatprep.subr.mxu0 0.0
  %278 = vmatpush1.msra.mxu0 0.0
  %279 = vmatprep.subr.mxu0 0.0
  %280 = vmatpush1.msra.mxu0 0.0
  %281 = vmatprep.subr.mxu0 0.0
  %282 = vmatpush1.msra.mxu0 0.0
  %283 = vmatprep.subr.mxu0 0.0
  %284 = vmatpush1.msra.mxu0 0.0
  %285 = vmatprep.subr.mxu0 0.0
  %286 = vmatpush1.msra.mxu0 0.0
  %287 = vmatprep.mubr.f32.mxu0 0.0
  %288 = vmatmul.mubr.f32.gmra.mrb[0].mxu0 %v221
  %v289 = vpop.f32.mrb[0].mxu0
  %v290 = vadd.f32 %v218, %v289
  %v291 = vpop.f32.mrb[0].mxu0
  %292 = vdwg.mxu0
  %v293 = vtanh.pop %v290
  %v294 = vld [vmem:[%s7] sm:$0xff]
  %v295 = vld [vmem:[%s7 + $0x8] sm:$0xff]
  %v296 = vld [vmem:[%s8] sm:$0x1]
  %v298 = vlaneseq
  %v299 = vshrl.u32 %v298, 7
  %v300 = vsub.s32 0, %v299
  %v301 = vrot.slane %v296, %v300
  %v304 = vsel %vm48, %v293, 0
  %306 = vmatprep.subr.mxu0 0.0
  %307 = vmatpush1.msra.mxu0 %v294
  %308 = vmatprep.subr.mxu0 0.0
  %309 = vmatpush1.msra.mxu0 %v295
  %310 = vmatprep.subr.mxu0 0.0
  %311 = vmatpush1.msra.mxu0 0.0
  %312 = vmatprep.subr.mxu0 0.0
  %313 = vmatpush1.msra.mxu0 0.0
  %314 = vmatprep.subr.mxu0 0.0
  %315 = vmatpush1.msra.mxu0 0.0
  %316 = vmatprep.subr.mxu0 0.0
  %317 = vmatpush1.msra.mxu0 0.0
  %318 = vmatprep.subr.mxu0 0.0
  %319 = vmatpush1.msra.mxu0 0.0
  %320 = vmatprep.subr.mxu0 0.0
  %321 = vmatpush1.msra.mxu0 0.0
  %322 = vmatprep.subr.mxu0 0.0
  %323 = vmatpush1.msra.mxu0 0.0
  %324 = vmatprep.subr.mxu0 0.0
  %325 = vmatpush1.msra.mxu0 0.0
  %326 = vmatprep.subr.mxu0 0.0
  %327 = vmatpush1.msra.mxu0 0.0
  %328 = vmatprep.subr.mxu0 0.0
  %329 = vmatpush1.msra.mxu0 0.0
  %330 = vmatprep.subr.mxu0 0.0
  %331 = vmatpush1.msra.mxu0 0.0
  %332 = vmatprep.subr.mxu0 0.0
  %333 = vmatpush1.msra.mxu0 0.0
  %334 = vmatprep.subr.mxu0 0.0
  %335 = vmatpush1.msra.mxu0 0.0
  %336 = vmatprep.subr.mxu0 0.0
  %337 = vmatpush1.msra.mxu0 0.0
  %338 = vmatprep.subr.mxu0 0.0
  %339 = vmatpush1.msra.mxu0 0.0
  %340 = vmatprep.subr.mxu0 0.0
  %341 = vmatpush1.msra.mxu0 0.0
  %342 = vmatprep.subr.mxu0 0.0
  %343 = vmatpush1.msra.mxu0 0.0
  %344 = vmatprep.subr.mxu0 0.0
  %345 = vmatpush1.msra.mxu0 0.0
  %346 = vmatprep.subr.mxu0 0.0
  %347 = vmatpush1.msra.mxu0 0.0
  %348 = vmatprep.subr.mxu0 0.0
  %349 = vmatpush1.msra.mxu0 0.0
  %350 = vmatprep.subr.mxu0 0.0
  %351 = vmatpush1.msra.mxu0 0.0
  %352 = vmatprep.subr.mxu0 0.0
  %353 = vmatpush1.msra.mxu0 0.0
  %354 = vmatprep.subr.mxu0 0.0
  %355 = vmatpush1.msra.mxu0 0.0
  %356 = vmatprep.subr.mxu0 0.0
  %357 = vmatpush1.msra.mxu0 0.0
  %358 = vmatprep.subr.mxu0 0.0
  %359 = vmatpush1.msra.mxu0 0.0
  %360 = vmatprep.subr.mxu0 0.0
  %361 = vmatpush1.msra.mxu0 0.0
  %362 = vmatprep.subr.mxu0 0.0
  %363 = vmatpush1.msra.mxu0 0.0
  %364 = vmatprep.subr.mxu0 0.0
  %365 = vmatpush1.msra.mxu0 0.0
  %366 = vmatprep.subr.mxu0 0.0
  %367 = vmatpush1.msra.mxu0 0.0
  %368 = vmatprep.subr.mxu0 0.0
  %369 = vmatpush1.msra.mxu0 0.0
  %370 = vmatprep.mubr.f32.mxu0 0.0
  %371 = vmatmul.mubr.f32.gmra.mrb[0].mxu0 %v304
  %v372 = vpop.f32.mrb[0].mxu0
  %v373 = vadd.f32 %v301, %v372
  %v374 = vpop.f32.mrb[0].mxu0
  %375 = vdwg.mxu0
  %v376 = vld [vmem:[%s9] sm:$0x1]
  %v378 = vlaneseq
  %v379 = vshrl.u32 %v378, 7
  %v380 = vsub.s32 0, %v379
  %v381 = vrot.slane %v376, %v380
  %v383 = vmax.f32 %v373, %v381
  %v384 = vld [vmem:[%s10] sm:$0x1]
  %v386 = vlaneseq
  %v387 = vshrl.u32 %v386, 7
  %v388 = vsub.s32 0, %v387
  %v389 = vrot.slane %v384, %v388
  %v391 = vmin.f32 %v383, %v389
  %392 = vst [vmem:[%s11] sm:$0xff] %v391
  // Predicated region
  $region46: #{gaussian_policy_forward.1} parent=0 // pred_check
    _
  $region47: #{gaussian_policy_forward.1} parent=0 // pred_check_branch
    %394 = sbr.rel (0) target = $region49
  $region48: #{gaussian_policy_forward.1} parent=0 // pred_region
    _
  $region49: #{gaussian_policy_forward.1} parent=0 // pred_fallthru
    _
  // Predicated region
  $region50: #{gaussian_policy_forward.1} parent=0 // pred_check
    _
  $region51: #{gaussian_policy_forward.1} parent=0 // pred_check_branch
    %396 = sbr.rel (0) target = $region53
  $region52: #{gaussian_policy_forward.1} parent=0 // pred_region
    _
  $region53: #{gaussian_policy_forward.1} parent=0 // pred_fallthru
    _

</llo_original>
